<compile_context>
chip_gen: v5e
topology: v5e:2x2
jax: 0.10.0
libtpu: 0.0.40
codegen_flags: <defaults>
</compile_context>

<pallas_src>
import math

import jax
import jax.numpy as jnp
from jax.experimental import pallas as pl
from jax.experimental.pallas import tpu as pltpu


# ----------------------------------------------------------------------------
# Kernels
# ----------------------------------------------------------------------------
def ffn_kernel_f32_out(x_ref, w1_ref, b1_ref, w2_ref, b2_ref, o_ref):
    """Variant used when the output dtype is f32: the resident output block is
    the accumulator (no VMEM scratch).

    x_ref:  [tm, H]   row tile of the flattened input
    w1_ref: [H,  tk]  dense1 weight slab, (in, out) layout
    b1_ref: [1,  tk]
    w2_ref: [tk, O ]  dense2 weight slab, (in, out) layout
    b2_ref: [1,  O ]
    o_ref:  [tm, O ]  f32, block index constant across k -> resident accumulator
    """
    k = pl.program_id(1)

    # dense1 chunk + bias + ReLU (bf16 MXU when weights are bf16, f32 accum).
    x = x_ref[...].astype(w1_ref.dtype)   # no-op when dtypes already match
    h = jnp.dot(x, w1_ref[...], preferred_element_type=jnp.float32)
    h = jnp.maximum(h + b1_ref[...].astype(jnp.float32), 0.0)
    # dropout: eval/inference mode == identity.

    part = jnp.dot(h.astype(w2_ref.dtype), w2_ref[...],
                   preferred_element_type=jnp.float32)

    @pl.when(k == 0)
    def _first():
        o_ref[...] = part          # direct write, no zero-init pass

    @pl.when(k > 0)
    def _accumulate():
        o_ref[...] += part

    @pl.when(k == pl.num_programs(1) - 1)
    def _bias():
        o_ref[...] += b2_ref[...].astype(jnp.float32)


def ffn_kernel_acc(x_ref, w1_ref, b1_ref, w2_ref, b2_ref, o_ref, acc_ref):
    """Variant used when the output dtype is not f32: f32 VMEM accumulator."""
    k = pl.program_id(1)

    x = x_ref[...].astype(w1_ref.dtype)
    h = jnp.dot(x, w1_ref[...], preferred_element_type=jnp.float32)
    h = jnp.maximum(h + b1_ref[...].astype(jnp.float32), 0.0)
    # dropout: eval/inference mode == identity.

    part = jnp.dot(h.astype(w2_ref.dtype), w2_ref[...],
                   preferred_element_type=jnp.float32)

    @pl.when(k == 0)
    def _first():
        acc_ref[...] = part

    @pl.when(k > 0)
    def _accumulate():
        acc_ref[...] += part

    @pl.when(k == pl.num_programs(1) - 1)
    def _finalize():
        o_ref[...] = (acc_ref[...] + b2_ref[...].astype(jnp.float32)).astype(o_ref.dtype)


# ----------------------------------------------------------------------------
# Tile / VMEM planners (generation-aware)
# ----------------------------------------------------------------------------
def _round_down(x, m):
    return (x // m) * m


def _vmem_plan():
    """Returns (plan_budget_bytes, vmem_limit_bytes).

    v5e/v6e have 128 MiB of physical VMEM per TensorCore; v7x only 64 MiB.
    Tiles are planned inside `plan_budget`; `vmem_limit` is the scoped VMEM
    requested from Mosaic (headroom left for internal scratch either way).
    """
    physical = 64 << 20                       # conservative default == v7x
    try:
        info = pltpu.get_tpu_info()
        physical = int(getattr(info, "vmem_capacity_bytes", physical)) or physical
    except Exception:
        pass                                  # query unavailable: keep v7x-safe default
    if physical >= (128 << 20):
        return 96 << 20, 108 << 20            # v5e / v6e
    return 40 << 20, 48 << 20                 # v7x-sized VMEM


def _plan_kdim_tile(two_h, H, O, w_bytes, budget):
    """2H-chunk width: full 2H when small, otherwise the largest 256- (or 128-)
    aligned divisor of 2H whose double-buffered W1/W2 slabs fit in ~half the
    plan budget (caps at 2048)."""
    if two_h <= 512 or two_h % 128 != 0:
        # Non-128-aligned 2H only reaches here if prepare_params padding was
        # skipped; fall back to a fully resident W1/W2 (correct, less scalable).
        return two_h
    per_tk = 2 * (H + O) * w_bytes            # bytes per unit of tk, double-buffered
    tk_cap = max(256, (budget // 2) // max(per_tk, 1))
    tk_cap = min(tk_cap, 2048, two_h)
    step = 256 if two_h % 256 == 0 else 128   # 256-aligned chunks feed the 256x256 MXU
    tk_cap = max(step, _round_down(tk_cap, step))
    for tk in range(tk_cap, step - 1, -step):
        if two_h % tk == 0:
            return tk
    return two_h


def _plan_row_tile(M, per_row_bytes, resident_weight_bytes, budget):
    """Row-tile: never below 128 rows (MXU fill), 128/256-aligned, as large as
    the VMEM budget allows (bigger tm => fewer weight re-reads from HBM), while
    keeping >= 2 row tiles when M permits (v7x's two TensorCores shard the
    "parallel" axis)."""
    if M <= 128:
        return M                               # full-dim block is always legal
    avail = max(budget - resident_weight_bytes, per_row_bytes * 128)
    tm = min(avail // max(per_row_bytes, 1), 1024, M)
    tm = max(128, _round_down(tm, 128))
    if tm >= 512:
        tm = _round_down(tm, 256)
    if tm >= M and M >= 256:
        tm = max(128, _round_down(M // 2, 128))
    return int(tm)


# ----------------------------------------------------------------------------
# Forward wrapper
# ----------------------------------------------------------------------------
def position_wise_ffn(x, w1_t, b1, w2_t, b2, *, tm=None, tk=None):
    """Fused PositionWiseFFN forward (eval-mode dropout).

    x:    [B, S, H]
    w1_t: [H, 2H]  dense1 weight, (in, out) layout (see prepare_params)
    b1:   [2H]
    w2_t: [2H, O]  dense2 weight, (in, out) layout
    b2:   [O]
    """
    B, S, H = x.shape
    if w1_t.shape[0] != H:
        raise ValueError("w1_t must be (H, 2H) — did you call prepare_params()?")
    two_h = w1_t.shape[1]
    if w2_t.shape[0] != two_h or b1.shape[0] != two_h:
        raise ValueError("w2_t/b1 2H dim mismatch with w1_t")
    O = w2_t.shape[1]
    M = B * S

    out_dtype = x.dtype
    f32_out = jnp.dtype(out_dtype) == jnp.float32

    x2d = x.reshape(M, H)
    b1_2d = b1.reshape(1, two_h)
    b2_2d = b2.reshape(1, O)

    x_bytes = jnp.dtype(x.dtype).itemsize
    w_bytes = jnp.dtype(w1_t.dtype).itemsize
    out_bytes = jnp.dtype(out_dtype).itemsize

    plan_budget, vmem_limit = _vmem_plan()

    # --- tk (2H-chunk) -------------------------------------------------------
    if tk is None:
        tk = _plan_kdim_tile(two_h, H, O, w_bytes, plan_budget)
    if tk != two_h and (two_h % tk != 0 or tk % 128 != 0):
        raise ValueError("tk must equal 2H, or be a multiple of 128 that divides 2H "
                         "(partial 2H chunks would feed padding into the reduction)")

    # --- tm (row tile) -------------------------------------------------------
    if tm is None:
        per_row = (2 * H * x_bytes            # x tile, double-buffered
                   + 2 * O * out_bytes        # out tile, double-buffered
                   + (0 if f32_out else O * 4)  # f32 acc scratch (bf16-out path only)
                   + tk * 4)                  # [tm, tk] f32 intermediate
        resident_w = 2 * (H * tk + tk * O + tk + O) * w_bytes
        tm = _plan_row_tile(M, per_row, resident_w, plan_budget)
    else:
        tm = int(tm)
        if tm >= M:
            tm = M
        else:
            sublane = 16 if jnp.dtype(x.dtype) == jnp.bfloat16 else 8
            tm = max(sublane, _round_down(tm, sublane))

    grid_m = pl.cdiv(M, tm)
    grid_k = pl.cdiv(two_h, tk)
    # NOTE: if tm does not divide M, the last row block is partial; this is safe
    # because rows are independent and Pallas masks the out-of-bounds rows.

    # --- cost hint (weights are re-streamed grid_m times when grid_k > 1) -----
    weight_bytes = (H * two_h + two_h * O + two_h + O) * w_bytes
    weight_traffic = weight_bytes * (grid_m if grid_k > 1 else 1)
    cost = pl.CostEstimate(
        flops=2 * M * H * two_h + 2 * M * two_h * O,
        transcendentals=0,
        bytes_accessed=int(M * H * x_bytes + M * O * out_bytes + weight_traffic),
    )

    in_specs = [
        pl.BlockSpec((tm, H), lambda i, k: (i, 0)),     # x row tile
        pl.BlockSpec((H, tk), lambda i, k: (0, k)),     # W1 slab
        pl.BlockSpec((1, tk), lambda i, k: (0, k)),     # b1 slab
        pl.BlockSpec((tk, O), lambda i, k: (k, 0)),     # W2 slab
        pl.BlockSpec((1, O), lambda i, k: (0, 0)),      # b2 (constant block)
    ]
    out_specs = pl.BlockSpec((tm, O), lambda i, k: (i, 0))

    if f32_out:
        kernel = ffn_kernel_f32_out
        scratch = ()                                    # output block is the accumulator
    else:
        kernel = ffn_kernel_acc
        scratch = (pltpu.VMEM((tm, O), jnp.float32),)

    grid_spec = pltpu.PrefetchScalarGridSpec(
        num_scalar_prefetch=0,
        grid=(grid_m, grid_k),
        in_specs=in_specs,
        out_specs=out_specs,
        scratch_shapes=scratch,
    )

    out2d = pl.pallas_call(
        kernel,
        out_shape=jax.ShapeDtypeStruct((M, O), out_dtype),
        grid_spec=grid_spec,
        compiler_params=pltpu.CompilerParams(
            dimension_semantics=("parallel", "arbitrary"),
            vmem_limit_bytes=int(vmem_limit),
        ),
        cost_estimate=cost,
    )(x2d, w1_t, b1_2d, w2_t, b2_2d)

    return out2d.reshape(B, S, O)


# ----------------------------------------------------------------------------
# Parameter helpers
# ----------------------------------------------------------------------------
def init_params(key, hidden_dim, outdim, dtype=jnp.float32):
    """Mimics torch nn.Linear default init; returns torch-layout (out, in) weights."""
    k1, k2, k3, k4 = jax.random.split(key, 4)
    two_h = hidden_dim * 2
    bound1 = 1.0 / math.sqrt(hidden_dim)
    bound2 = 1.0 / math.sqrt(two_h)
    w1 = jax.random.uniform(k1, (two_h, hidden_dim), dtype, -bound1, bound1)
    b1 = jax.random.uniform(k2, (two_h,), dtype, -bound1, bound1)
    w2 = jax.random.uniform(k3, (outdim, two_h), dtype, -bound2, bound2)
    b2 = jax.random.uniform(k4, (outdim,), dtype, -bound2, bound2)
    return w1, b1, w2, b2


def prepare_params(w1, b1, w2, b2, compute_dtype=None):
    """One-time conversion of torch-layout weights to the kernel layout.

    * Transposes W1/W2 to (in, out).
    * Zero-pads the 2H dim to a multiple of 128 (exact: ReLU(x@0 + 0) = 0 and
      0 @ W2 adds 0) so the chunked 2H reduction stays available for odd 2H.
    * Optionally casts the weights to `compute_dtype` (e.g. jnp.bfloat16) for
      native-dtype MXU matmuls; biases stay in their original dtype and the
      kernel accumulates in f32 regardless.
    Call at parameter-load time, NOT inside the per-step forward.
    """
    w1_t = jnp.asarray(w1).T        # (H, 2H)
    w2_t = jnp.asarray(w2).T        # (2H, O)
    b1 = jnp.asarray(b1)
    b2 = jnp.asarray(b2)
    two_h = w1_t.shape[1]
    pad = (-two_h) % 128 if two_h > 128 else 0
    if pad:
        w1_t = jnp.pad(w1_t, ((0, 0), (0, pad)))
        b1 = jnp.pad(b1, (0, pad))
        w2_t = jnp.pad(w2_t, ((0, pad), (0, 0)))
    if compute_dtype is not None:
        w1_t = w1_t.astype(compute_dtype)
        w2_t = w2_t.astype(compute_dtype)
    return w1_t, b1, w2_t, b2


# ----------------------------------------------------------------------------
# Demo / self-test
# ----------------------------------------------------------------------------
if __name__ == "__main__":
    key = jax.random.PRNGKey(0)
    kx, kp = jax.random.split(key)

    # Small but lane-dense shapes (H, 2H, O multiples of 128 -> unmasked vst).
    B, S, H, O = 2, 64, 128, 128          # M = 128 rows, 2H = 256
    x = jax.random.normal(kx, (B, S, H), dtype=jnp.float32)

    w1, b1, w2, b2 = init_params(kp, H, O)        # torch (out, in) layout

    # Plain-JAX reference (eval-mode dropout == identity).
    h_ref = jnp.maximum(x.reshape(-1, H) @ w1.T + b1, 0.0)
    ref = (h_ref @ w2.T + b2).reshape(B, S, O)

    # A) f32 weights, planner defaults: tm = M = 128, tk = 2H (resident weights).
    w1_t, b1p, w2_t, b2p = prepare_params(w1, b1, w2, b2)
    out_a = jax.block_until_ready(position_wise_ffn(x, w1_t, b1p, w2_t, b2p))

    # B) f32, forced chunked 2H reduction (grid = (1, 2)) -> output-block accumulate path.
    out_b = jax.block_until_ready(
        position_wise_ffn(x, w1_t, b1p, w2_t, b2p, tm=128, tk=128))

    # C) bf16 MXU compute (weights cast once in prepare_params), f32 output.
    w1_bt, b1b, w2_bt, b2b = prepare_params(w1, b1, w2, b2, compute_dtype=jnp.bfloat16)
    out_c = jax.block_until_ready(
        position_wise_ffn(x, w1_bt, b1b, w2_bt, b2b, tk=128))

    # D) bf16 activations + bf16 output -> f32 VMEM-accumulator kernel path.
    out_d = jax.block_until_ready(
        position_wise_ffn(x.astype(jnp.bfloat16), w1_bt, b1b, w2_bt, b2b, tk=128))

    assert out_a.shape == (B, S, O) and out_b.shape == (B, S, O)
    assert jnp.allclose(out_a, ref, atol=1e-4, rtol=1e-4)
    assert jnp.allclose(out_b, ref, atol=1e-4, rtol=1e-4)
    # bf16 MXU inputs, f32 accumulation: loose tolerance vs. the f32 reference.
    assert jnp.allclose(out_c, ref, atol=1e-1, rtol=1e-1)
    assert jnp.allclose(out_d.astype(jnp.float32), ref, atol=2e-1, rtol=2e-1)

    print("KERNEL_OK")
</pallas_src>

<mosaic_0001>
module attributes {stable_mosaic.version = 11 : i64} {
  func.func @ffn_kernel_f32_out(%arg0: i32, %arg1: i32, %arg2: memref<128x128xf32, #tpu.memory_space<vmem>>, %arg3: memref<128x256xf32, #tpu.memory_space<vmem>>, %arg4: memref<1x256xf32, #tpu.memory_space<vmem>>, %arg5: memref<256x128xf32, #tpu.memory_space<vmem>>, %arg6: memref<1x128xf32, #tpu.memory_space<vmem>>, %arg7: memref<128x128xf32, #tpu.memory_space<vmem>>) attributes {dimension_semantics = [#tpu.dimension_semantics<parallel>, #tpu.dimension_semantics<arbitrary>], iteration_bounds = array<i64: 1, 1>, scalar_prefetch = 0 : i64, scratch_operands = 0 : i64, tpu.core_type = #tpu.core_type<tc>, window_params = [{transform_indices = @transform_0, window_bounds = array<i64: 128, 128>}, {transform_indices = @transform_1, window_bounds = array<i64: 128, 256>}, {transform_indices = @transform_2, window_bounds = array<i64: 1, 256>}, {transform_indices = @transform_3, window_bounds = array<i64: 256, 128>}, {pipeline_mode = #tpu.pipeline_mode<synchronous>, transform_indices = @transform_4, window_bounds = array<i64: 1, 128>}, {transform_indices = @transform_5, window_bounds = array<i64: 128, 128>}]} {
    %c0 = arith.constant 0 : index
    %c0_0 = arith.constant 0 : index
    %0 = vector.load %arg2[%c0, %c0_0] : memref<128x128xf32, #tpu.memory_space<vmem>>, vector<128x128xf32>
    %c0_1 = arith.constant 0 : index
    %c0_2 = arith.constant 0 : index
    %1 = vector.load %arg3[%c0_1, %c0_2] : memref<128x256xf32, #tpu.memory_space<vmem>>, vector<128x256xf32>
    %cst = arith.constant dense<0.000000e+00> : vector<128x256xf32>
    %2 = tpu.matmul %0, %1, %cst {dimension_numbers = #tpu.dot_dimension_numbers<[1], [0], [0], [1], [0, 0, 1, 1], [], []>} : vector<128x128xf32>, vector<128x256xf32>, vector<128x256xf32> -> vector<128x256xf32>
    %c0_3 = arith.constant 0 : index
    %c0_4 = arith.constant 0 : index
    %3 = vector.load %arg4[%c0_3, %c0_4] : memref<1x256xf32, #tpu.memory_space<vmem>>, vector<1x256xf32>
    %4 = vector.broadcast %3 : vector<1x256xf32> to vector<128x256xf32>
    %5 = arith.addf %2, %4 : vector<128x256xf32>
    %cst_5 = arith.constant 0.000000e+00 : f32
    %6 = vector.broadcast %cst_5 : f32 to vector<128x256xf32>
    %7 = arith.maximumf %5, %6 : vector<128x256xf32>
    %c0_6 = arith.constant 0 : index
    %c0_7 = arith.constant 0 : index
    %8 = vector.load %arg5[%c0_6, %c0_7] : memref<256x128xf32, #tpu.memory_space<vmem>>, vector<256x128xf32>
    %cst_8 = arith.constant dense<0.000000e+00> : vector<128x128xf32>
    %9 = tpu.matmul %7, %8, %cst_8 {dimension_numbers = #tpu.dot_dimension_numbers<[1], [0], [0], [1], [0, 0, 1, 1], [], []>} : vector<128x256xf32>, vector<256x128xf32>, vector<128x128xf32> -> vector<128x128xf32>
    %c0_i32 = arith.constant 0 : i32
    %10 = arith.cmpi eq, %arg1, %c0_i32 : i32
    %11 = arith.extui %10 : i1 to i32
    %c0_i32_9 = arith.constant 0 : i32
    %12 = arith.cmpi ne, %11, %c0_i32_9 : i32
    scf.if %12 {
      %c0_14 = arith.constant 0 : index
      %c0_15 = arith.constant 0 : index
      %19 = vector.load %arg7[%c0_14, %c0_15] : memref<128x128xf32, #tpu.memory_space<vmem>>, vector<128x128xf32>
      tpu.vector_store %arg7[%c0_14, %c0_15], %9 {strides = array<i32>} : memref<128x128xf32, #tpu.memory_space<vmem>>, vector<128x128xf32>,
    } else {
    }
    %c0_i32_10 = arith.constant 0 : i32
    %13 = arith.cmpi sgt, %arg1, %c0_i32_10 : i32
    %14 = arith.extui %13 : i1 to i32
    %c0_i32_11 = arith.constant 0 : i32
    %15 = arith.cmpi ne, %14, %c0_i32_11 : i32
    scf.if %15 {
      %c0_14 = arith.constant 0 : index
      %c0_15 = arith.constant 0 : index
      %19 = vector.load %arg7[%c0_14, %c0_15] : memref<128x128xf32, #tpu.memory_space<vmem>>, vector<128x128xf32>
      %20 = arith.addf %19, %9 : vector<128x128xf32>
      %c0_16 = arith.constant 0 : index
      %c0_17 = arith.constant 0 : index
      %21 = vector.load %arg7[%c0_16, %c0_17] : memref<128x128xf32, #tpu.memory_space<vmem>>, vector<128x128xf32>
      tpu.vector_store %arg7[%c0_16, %c0_17], %20 {strides = array<i32>} : memref<128x128xf32, #tpu.memory_space<vmem>>, vector<128x128xf32>,
    } else {
    }
    %c0_i32_12 = arith.constant 0 : i32
    %16 = arith.cmpi eq, %arg1, %c0_i32_12 : i32
    %17 = arith.extui %16 : i1 to i32
    %c0_i32_13 = arith.constant 0 : i32
    %18 = arith.cmpi ne, %17, %c0_i32_13 : i32
    scf.if %18 {
      %c0_14 = arith.constant 0 : index
      %c0_15 = arith.constant 0 : index
      %19 = vector.load %arg7[%c0_14, %c0_15] : memref<128x128xf32, #tpu.memory_space<vmem>>, vector<128x128xf32>
      %c0_16 = arith.constant 0 : index
      %c0_17 = arith.constant 0 : index
      %20 = vector.load %arg6[%c0_16, %c0_17] : memref<1x128xf32, #tpu.memory_space<vmem>>, vector<1x128xf32>
      %21 = vector.broadcast %20 : vector<1x128xf32> to vector<128x128xf32>
      %22 = arith.addf %19, %21 : vector<128x128xf32>
      %c0_18 = arith.constant 0 : index
      %c0_19 = arith.constant 0 : index
      %23 = vector.load %arg7[%c0_18, %c0_19] : memref<128x128xf32, #tpu.memory_space<vmem>>, vector<128x128xf32>
      tpu.vector_store %arg7[%c0_18, %c0_19], %22 {strides = array<i32>} : memref<128x128xf32, #tpu.memory_space<vmem>>, vector<128x128xf32>,
    } else {
    }
    return
  }
  func.func @transform_0(%arg0: i32, %arg1: i32) -> (i32, i32) {
    %c0_i32 = arith.constant 0 : i32
    %c0_i32_0 = arith.constant 0 : i32
    return %arg0, %c0_i32 : i32, i32
  }
  func.func @transform_1(%arg0: i32, %arg1: i32) -> (i32, i32) {
    %c0_i32 = arith.constant 0 : i32
    %c0_i32_0 = arith.constant 0 : i32
    return %c0_i32, %arg1 : i32, i32
  }
  func.func @transform_2(%arg0: i32, %arg1: i32) -> (i32, i32) {
    %c0_i32 = arith.constant 0 : i32
    %c0_i32_0 = arith.constant 0 : i32
    return %c0_i32, %arg1 : i32, i32
  }
  func.func @transform_3(%arg0: i32, %arg1: i32) -> (i32, i32) {
    %c0_i32 = arith.constant 0 : i32
    %c0_i32_0 = arith.constant 0 : i32
    return %arg1, %c0_i32 : i32, i32
  }
  func.func @transform_4(%arg0: i32, %arg1: i32) -> (i32, i32) {
    %c0_i32 = arith.constant 0 : i32
    %c0_i32_0 = arith.constant 0 : i32
    %c0_i32_1 = arith.constant 0 : i32
    return %c0_i32, %c0_i32_0 : i32, i32
  }
  func.func @transform_5(%arg0: i32, %arg1: i32) -> (i32, i32) {
    %c0_i32 = arith.constant 0 : i32
    %c0_i32_0 = arith.constant 0 : i32
    return %arg0, %c0_i32 : i32, i32
  }
}

</mosaic_0001>

<llo_original>
// kernel: tpu_custom_call.1
$region0: #{tpu_custom_call.1}
  #allocation0 [shape = 'u32[]', space=smem, size = 0x4, offset = 0x4, fixed_abs, tag = 'smem constant byte address 0x4 - core index']
  #allocation1 [shape = 'u32[72,128]{1,0:T(1,128)}', space=vmem, size = 0x9000, scoped, tag = 'internal scratch']
  %s0 = inlined_call_operand.hbm [shape: f32[128,128], index: 0, kind: input, shape index: {}]
  %s1 = inlined_call_operand.hbm [shape: f32[128,256], index: 1, kind: input, shape index: {}]
  %s2 = inlined_call_operand.hbm [shape: f32[1,256], index: 2, kind: input, shape index: {}]
  %s3 = inlined_call_operand.hbm [shape: f32[256,128], index: 3, kind: input, shape index: {}]
  %s4 = inlined_call_operand.vmem [shape: f32[1,128], index: 4, kind: input, shape index: {}]
  %s5 = inlined_call_operand.hbm [shape: f32[128,128], index: 5, kind: output, shape index: {}]
  %s6 = sld [smem:[#allocation0]]
  $region58: #{tpu_custom_call.1} parent=0
    _
  %s8 = ssub.s32 1, %s6
  %s9 = scalar_select 0, %s8, %s6
  $region1: #{tpu_custom_call.1} parent=0
    #allocation2 [shape = 'u8[65536]{0}', space=vmem, size = 0x10000, scoped, tag = 'input window, operand 0, single buffered']
    #allocation3 [shape = 's32[1]{0}', space=sflag, size = 0x4, scoped, tag = 'scoped memory for tpu_custom_call.1']
    #allocation4 [shape = 's32[1]{0}', space=sflag, size = 0x4, scoped, tag = 'scoped memory for tpu_custom_call.1']
    #allocation5 [shape = 'u8[131072]{0}', space=vmem, size = 0x20000, scoped, tag = 'input window, operand 1, single buffered']
    #allocation6 [shape = 's32[1]{0}', space=sflag, size = 0x4, scoped, tag = 'scoped memory for tpu_custom_call.1']
    #allocation7 [shape = 'u8[1024]{0}', space=vmem, size = 0x400, scoped, tag = 'input window, operand 2, single buffered']
    #allocation8 [shape = 'u8[131072]{0}', space=vmem, size = 0x20000, scoped, tag = 'input window, operand 3, single buffered']
    #allocation9 [shape = 's32[1]{0}', space=sflag, size = 0x4, scoped, tag = 'scoped memory for tpu_custom_call.1']
    #allocation10 [shape = 'u8[65536]{0}', space=vmem, size = 0x10000, scoped, tag = 'output window, operand 0, single buffered']
    %10 = vsyncpa [#allocation3], 0
    %11 = vsyncpa [#allocation6], 0
    %12 = vsyncpa [#allocation9], 0
    %13 = vsyncpa [#allocation4], 0
    // Predicated region
    $region2: #{tpu_custom_call.1} parent=1 // pred_check
      _
    $region3: #{tpu_custom_call.1} parent=1 // pred_check_branch
      %15 = sbr.rel (0) target = $region5
    $region4: #{tpu_custom_call.1} parent=1 // pred_region
      %17 = vsyncadd [#allocation3], 0
      %s18 = sshll.u32 %s0, 4
      %s19 = int_to_ptr.hbm [resolvable:$true] %s18
      %s20 = sshll.u32 [#allocation2], 4
      %s21 = int_to_ptr.vmem [resolvable:$true] %s20
      %26 = dma.hbm_to_vmem [thread:$0]  %s19, 2048, %s21, [#allocation3], 128, 128, 8
    $region5: #{tpu_custom_call.1} parent=1 // pred_fallthru
      _
    // Predicated region
    $region6: #{tpu_custom_call.1} parent=1 // pred_check
      _
    $region7: #{tpu_custom_call.1} parent=1 // pred_check_branch
      %28 = sbr.rel (0) target = $region9
    $region8: #{tpu_custom_call.1} parent=1 // pred_region
      %30 = vsyncadd [#allocation6], 0
      %s31 = sshll.u32 %s1, 4
      %s32 = int_to_ptr.hbm [resolvable:$true] %s31
      %s33 = sshll.u32 [#allocation5], 4
      %s34 = int_to_ptr.vmem [resolvable:$true] %s33
      %39 = dma.hbm_to_vmem [thread:$0]  %s32, 4096, %s34, [#allocation6], 256, 256, 16
    $region9: #{tpu_custom_call.1} parent=1 // pred_fallthru
      _
    // Predicated region
    $region10: #{tpu_custom_call.1} parent=1 // pred_check
      _
    $region11: #{tpu_custom_call.1} parent=1 // pred_check_branch
      %41 = sbr.rel (0) target = $region13
    $region12: #{tpu_custom_call.1} parent=1 // pred_region
      %43 = vsyncadd [#allocation6], 0
      %s45 = sshll.u32 %s2, 4
      %s46 = int_to_ptr.hbm [resolvable:$true] %s45
      %s47 = sshll.u32 [#allocation7], 4
      %s48 = int_to_ptr.vmem [resolvable:$true] %s47
      %50 = dma.hbm_to_vmem [thread:$0]  %s46, 32, %s48, [#allocation6]
    $region13: #{tpu_custom_call.1} parent=1 // pred_fallthru
      _
    // Predicated region
    $region14: #{tpu_custom_call.1} parent=1 // pred_check
      _
    $region15: #{tpu_custom_call.1} parent=1 // pred_check_branch
      %52 = sbr.rel (0) target = $region17
    $region16: #{tpu_custom_call.1} parent=1 // pred_region
      %54 = vsyncadd [#allocation9], 0
      %s55 = sshll.u32 %s3, 4
      %s56 = int_to_ptr.hbm [resolvable:$true] %s55
      %s57 = sshll.u32 [#allocation8], 4
      %s58 = int_to_ptr.vmem [resolvable:$true] %s57
      %63 = dma.hbm_to_vmem [thread:$0]  %s56, 4096, %s58, [#allocation9], 128, 128, 8
    $region17: #{tpu_custom_call.1} parent=1 // pred_fallthru
      _
    // Predicated region
    $region18: #{tpu_custom_call.1} parent=1 // pred_check
      _
    $region19: #{tpu_custom_call.1} parent=1 // pred_check_branch
      %65 = sbr.rel (0) target = $region21
    $region20: #{tpu_custom_call.1} parent=1 // pred_region
      _
    $region21: #{tpu_custom_call.1} parent=1 // pred_fallthru
      _
    // Predicated region
    $region22: #{tpu_custom_call.1} parent=1 // pred_check
      _
    $region23: #{tpu_custom_call.1} parent=1 // pred_check_branch
      %67 = sbr.rel (0) target = $region25
    $region24: #{tpu_custom_call.1} parent=1 // pred_region
      %69 = dma.done [#allocation3], 2048
    $region25: #{tpu_custom_call.1} parent=1 // pred_fallthru
      _
    // Predicated region
    $region26: #{tpu_custom_call.1} parent=1 // pred_check
      _
    $region27: #{tpu_custom_call.1} parent=1 // pred_check_branch
      %71 = sbr.rel (0) target = $region29
    $region28: #{tpu_custom_call.1} parent=1 // pred_region
      %73 = dma.done [#allocation6], 4096
    $region29: #{tpu_custom_call.1} parent=1 // pred_fallthru
      _
    // Predicated region
    $region30: #{tpu_custom_call.1} parent=1 // pred_check
      _
    $region31: #{tpu_custom_call.1} parent=1 // pred_check_branch
      %75 = sbr.rel (0) target = $region33
    $region32: #{tpu_custom_call.1} parent=1 // pred_region
      %77 = dma.done [#allocation6], 32
    $region33: #{tpu_custom_call.1} parent=1 // pred_fallthru
      _
    // Predicated region
    $region34: #{tpu_custom_call.1} parent=1 // pred_check
      _
    $region35: #{tpu_custom_call.1} parent=1 // pred_check_branch
      %79 = sbr.rel (0) target = $region37
    $region36: #{tpu_custom_call.1} parent=1 // pred_region
      %81 = dma.done [#allocation9], 4096
    $region37: #{tpu_custom_call.1} parent=1 // pred_fallthru
      _
    %v82 = vld [vmem:[#allocation2] sm:$0xff]
    %v83 = vld [vmem:[#allocation2 + $0x8] sm:$0xff]
    %v84 = vld [vmem:[#allocation2 + $0x10] sm:$0xff]
    %v85 = vld [vmem:[#allocation2 + $0x18] sm:$0xff]
    %v86 = vld [vmem:[#allocation2 + $0x20] sm:$0xff]
    %v87 = vld [vmem:[#allocation2 + $0x28] sm:$0xff]
    %v88 = vld [vmem:[#allocation2 + $0x30] sm:$0xff]
    %v89 = vld [vmem:[#allocation2 + $0x38] sm:$0xff]
    %v90 = vld [vmem:[#allocation2 + $0x40] sm:$0xff]
    %v91 = vld [vmem:[#allocation2 + $0x48] sm:$0xff]
    %v92 = vld [vmem:[#allocation2 + $0x50] sm:$0xff]
    %v93 = vld [vmem:[#allocation2 + $0x58] sm:$0xff]
    %v94 = vld [vmem:[#allocation2 + $0x60] sm:$0xff]
    %v95 = vld [vmem:[#allocation2 + $0x68] sm:$0xff]
    %v96 = vld [vmem:[#allocation2 + $0x70] sm:$0xff]
    %v97 = vld [vmem:[#allocation2 + $0x78] sm:$0xff]
    %v98 = vld [vmem:[#allocation5] sm:$0xff]
    %v99 = vld [vmem:[#allocation5 + $0x8] sm:$0xff]
    %v100 = vld [vmem:[#allocation5 + $0x10] sm:$0xff]
    %v101 = vld [vmem:[#allocation5 + $0x18] sm:$0xff]
    %v102 = vld [vmem:[#allocation5 + $0x20] sm:$0xff]
    %v103 = vld [vmem:[#allocation5 + $0x28] sm:$0xff]
    %v104 = vld [vmem:[#allocation5 + $0x30] sm:$0xff]
    %v105 = vld [vmem:[#allocation5 + $0x38] sm:$0xff]
    %v106 = vld [vmem:[#allocation5 + $0x40] sm:$0xff]
    %v107 = vld [vmem:[#allocation5 + $0x48] sm:$0xff]
    %v108 = vld [vmem:[#allocation5 + $0x50] sm:$0xff]
    %v109 = vld [vmem:[#allocation5 + $0x58] sm:$0xff]
    %v110 = vld [vmem:[#allocation5 + $0x60] sm:$0xff]
    %v111 = vld [vmem:[#allocation5 + $0x68] sm:$0xff]
    %v112 = vld [vmem:[#allocation5 + $0x70] sm:$0xff]
    %v113 = vld [vmem:[#allocation5 + $0x78] sm:$0xff]
    %v114 = vld [vmem:[#allocation5 + $0x80] sm:$0xff]
    %v115 = vld [vmem:[#allocation5 + $0x88] sm:$0xff]
    %v116 = vld [vmem:[#allocation5 + $0x90] sm:$0xff]
    %v117 = vld [vmem:[#allocation5 + $0x98] sm:$0xff]
    %v118 = vld [vmem:[#allocation5 + $0xa0] sm:$0xff]
    %v119 = vld [vmem:[#allocation5 + $0xa8] sm:$0xff]
    %v120 = vld [vmem:[#allocation5 + $0xb0] sm:$0xff]
    %v121 = vld [vmem:[#allocation5 + $0xb8] sm:$0xff]
    %v122 = vld [vmem:[#allocation5 + $0xc0] sm:$0xff]
    %v123 = vld [vmem:[#allocation5 + $0xc8] sm:$0xff]
    %v124 = vld [vmem:[#allocation5 + $0xd0] sm:$0xff]
    %v125 = vld [vmem:[#allocation5 + $0xd8] sm:$0xff]
    %v126 = vld [vmem:[#allocation5 + $0xe0] sm:$0xff]
    %v127 = vld [vmem:[#allocation5 + $0xe8] sm:$0xff]
    %v128 = vld [vmem:[#allocation5 + $0xf0] sm:$0xff]
    %v129 = vld [vmem:[#allocation5 + $0xf8] sm:$0xff]
    %v130 = vld [vmem:[#allocation7] sm:$0x3]
    %v132 = vperm.slane %v130, 0
    %v133 = vperm.slane %v130, 1
    %136 = vmatpush.msra.mxu0 %v128
    %137 = vmatpush.msra.mxu0 %v126
    %138 = vmatpush.msra.mxu0 %v124
    %139 = vmatpush.msra.mxu0 %v122
    %140 = vmatpush.msra.mxu0 %v120
    %141 = vmatpush.msra.mxu0 %v118
    %142 = vmatpush.msra.mxu0 %v116
    %143 = vmatpush.msra.mxu0 %v114
    %144 = vmatpush.msra.mxu0 %v112
    %145 = vmatpush.msra.mxu0 %v110
    %146 = vmatpush.msra.mxu0 %v108
    %147 = vmatpush.msra.mxu0 %v106
    %148 = vmatpush.msra.mxu0 %v104
    %149 = vmatpush.msra.mxu0 %v102
    %150 = vmatpush.msra.mxu0 %v100
    %151 = vmatpush.msra.mxu0 %v98
    %152 = vmatmul.f32.gmra.mxu0 %v82
    %v153 = vpop.f32.mrf.mxu0
    %v154 = vadd.f32 %v132, %v153
    %155 = vmatmul.f32.gmra.mxu0 %v83
    %v156 = vpop.f32.mrf.mxu0
    %v157 = vadd.f32 %v132, %v156
    %158 = vmatmul.f32.gmra.mxu0 %v84
    %v159 = vpop.f32.mrf.mxu0
    %v160 = vadd.f32 %v132, %v159
    %161 = vmatmul.f32.gmra.mxu0 %v85
    %v162 = vpop.f32.mrf.mxu0
    %v163 = vadd.f32 %v132, %v162
    %164 = vmatmul.f32.gmra.mxu0 %v86
    %v165 = vpop.f32.mrf.mxu0
    %v166 = vadd.f32 %v132, %v165
    %167 = vmatmul.f32.gmra.mxu0 %v87
    %v168 = vpop.f32.mrf.mxu0
    %v169 = vadd.f32 %v132, %v168
    %170 = vmatmul.f32.gmra.mxu0 %v88
    %v171 = vpop.f32.mrf.mxu0
    %v172 = vadd.f32 %v132, %v171
    %173 = vmatmul.f32.gmra.mxu0 %v89
    %v174 = vpop.f32.mrf.mxu0
    %v175 = vadd.f32 %v132, %v174
    %176 = vmatmul.f32.gmra.mxu0 %v90
    %v177 = vpop.f32.mrf.mxu0
    %v178 = vadd.f32 %v132, %v177
    %179 = vmatmul.f32.gmra.mxu0 %v91
    %v180 = vpop.f32.mrf.mxu0
    %v181 = vadd.f32 %v132, %v180
    %182 = vmatmul.f32.gmra.mxu0 %v92
    %v183 = vpop.f32.mrf.mxu0
    %v184 = vadd.f32 %v132, %v183
    %185 = vmatmul.f32.gmra.mxu0 %v93
    %v186 = vpop.f32.mrf.mxu0
    %v187 = vadd.f32 %v132, %v186
    %188 = vmatmul.f32.gmra.mxu0 %v94
    %v189 = vpop.f32.mrf.mxu0
    %v190 = vadd.f32 %v132, %v189
    %191 = vmatmul.f32.gmra.mxu0 %v95
    %v192 = vpop.f32.mrf.mxu0
    %v193 = vadd.f32 %v132, %v192
    %194 = vmatmul.f32.gmra.mxu0 %v96
    %v195 = vpop.f32.mrf.mxu0
    %v196 = vadd.f32 %v132, %v195
    %197 = vmatmul.f32.gmra.mxu0 %v97
    %v198 = vpop.f32.mrf.mxu0
    %v199 = vadd.f32 %v132, %v198
    %200 = vdwg.mxu0
    %201 = vmatpush.msra.mxu0 %v129
    %202 = vmatpush.msra.mxu0 %v127
    %203 = vmatpush.msra.mxu0 %v125
    %204 = vmatpush.msra.mxu0 %v123
    %205 = vmatpush.msra.mxu0 %v121
    %206 = vmatpush.msra.mxu0 %v119
    %207 = vmatpush.msra.mxu0 %v117
    %208 = vmatpush.msra.mxu0 %v115
    %209 = vmatpush.msra.mxu0 %v113
    %210 = vmatpush.msra.mxu0 %v111
    %211 = vmatpush.msra.mxu0 %v109
    %212 = vmatpush.msra.mxu0 %v107
    %213 = vmatpush.msra.mxu0 %v105
    %214 = vmatpush.msra.mxu0 %v103
    %215 = vmatpush.msra.mxu0 %v101
    %216 = vmatpush.msra.mxu0 %v99
    %217 = vmatmul.f32.gmra.mxu0 %v82
    %v218 = vpop.f32.mrf.mxu0
    %v219 = vadd.f32 %v133, %v218
    %220 = vmatmul.f32.gmra.mxu0 %v83
    %v221 = vpop.f32.mrf.mxu0
    %v222 = vadd.f32 %v133, %v221
    %223 = vmatmul.f32.gmra.mxu0 %v84
    %v224 = vpop.f32.mrf.mxu0
    %v225 = vadd.f32 %v133, %v224
    %226 = vmatmul.f32.gmra.mxu0 %v85
    %v227 = vpop.f32.mrf.mxu0
    %v228 = vadd.f32 %v133, %v227
    %229 = vmatmul.f32.gmra.mxu0 %v86
    %v230 = vpop.f32.mrf.mxu0
    %v231 = vadd.f32 %v133, %v230
    %232 = vmatmul.f32.gmra.mxu0 %v87
    %v233 = vpop.f32.mrf.mxu0
    %v234 = vadd.f32 %v133, %v233
    %235 = vmatmul.f32.gmra.mxu0 %v88
    %v236 = vpop.f32.mrf.mxu0
    %v237 = vadd.f32 %v133, %v236
    %238 = vmatmul.f32.gmra.mxu0 %v89
    %v239 = vpop.f32.mrf.mxu0
    %v240 = vadd.f32 %v133, %v239
    %241 = vmatmul.f32.gmra.mxu0 %v90
    %v242 = vpop.f32.mrf.mxu0
    %v243 = vadd.f32 %v133, %v242
    %244 = vmatmul.f32.gmra.mxu0 %v91
    %v245 = vpop.f32.mrf.mxu0
    %v246 = vadd.f32 %v133, %v245
    %247 = vmatmul.f32.gmra.mxu0 %v92
    %v248 = vpop.f32.mrf.mxu0
    %v249 = vadd.f32 %v133, %v248
    %250 = vmatmul.f32.gmra.mxu0 %v93
    %v251 = vpop.f32.mrf.mxu0
    %v252 = vadd.f32 %v133, %v251
    %253 = vmatmul.f32.gmra.mxu0 %v94
    %v254 = vpop.f32.mrf.mxu0
    %v255 = vadd.f32 %v133, %v254
    %256 = vmatmul.f32.gmra.mxu0 %v95
    %v257 = vpop.f32.mrf.mxu0
    %v258 = vadd.f32 %v133, %v257
    %259 = vmatmul.f32.gmra.mxu0 %v96
    %v260 = vpop.f32.mrf.mxu0
    %v261 = vadd.f32 %v133, %v260
    %262 = vmatmul.f32.gmra.mxu0 %v97
    %v263 = vpop.f32.mrf.mxu0
    %v264 = vadd.f32 %v133, %v263
    %265 = vdwg.mxu0
    %v266 = vmax.f32 %v154, 0.0
    %v267 = vmax.f32 %v219, 0.0
    %v268 = vmax.f32 %v157, 0.0
    %v269 = vmax.f32 %v222, 0.0
    %v270 = vmax.f32 %v160, 0.0
    %v271 = vmax.f32 %v225, 0.0
    %v272 = vmax.f32 %v163, 0.0
    %v273 = vmax.f32 %v228, 0.0
    %v274 = vmax.f32 %v166, 0.0
    %v275 = vmax.f32 %v231, 0.0
    %v276 = vmax.f32 %v169, 0.0
    %v277 = vmax.f32 %v234, 0.0
    %v278 = vmax.f32 %v172, 0.0
    %v279 = vmax.f32 %v237, 0.0
    %v280 = vmax.f32 %v175, 0.0
    %v281 = vmax.f32 %v240, 0.0
    %v282 = vmax.f32 %v178, 0.0
    %v283 = vmax.f32 %v243, 0.0
    %v284 = vmax.f32 %v181, 0.0
    %v285 = vmax.f32 %v246, 0.0
    %v286 = vmax.f32 %v184, 0.0
    %v287 = vmax.f32 %v249, 0.0
    %v288 = vmax.f32 %v187, 0.0
    %v289 = vmax.f32 %v252, 0.0
    %v290 = vmax.f32 %v190, 0.0
    %v291 = vmax.f32 %v255, 0.0
    %v292 = vmax.f32 %v193, 0.0
    %v293 = vmax.f32 %v258, 0.0
    %v294 = vmax.f32 %v196, 0.0
    %v295 = vmax.f32 %v261, 0.0
    %v296 = vmax.f32 %v199, 0.0
    %v297 = vmax.f32 %v264, 0.0
    %v298 = vld [vmem:[#allocation8] sm:$0xff]
    %v299 = vld [vmem:[#allocation8 + $0x8] sm:$0xff]
    %v300 = vld [vmem:[#allocation8 + $0x10] sm:$0xff]
    %v301 = vld [vmem:[#allocation8 + $0x18] sm:$0xff]
    %v302 = vld [vmem:[#allocation8 + $0x20] sm:$0xff]
    %v303 = vld [vmem:[#allocation8 + $0x28] sm:$0xff]
    %v304 = vld [vmem:[#allocation8 + $0x30] sm:$0xff]
    %v305 = vld [vmem:[#allocation8 + $0x38] sm:$0xff]
    %v306 = vld [vmem:[#allocation8 + $0x40] sm:$0xff]
    %v307 = vld [vmem:[#allocation8 + $0x48] sm:$0xff]
    %v308 = vld [vmem:[#allocation8 + $0x50] sm:$0xff]
    %v309 = vld [vmem:[#allocation8 + $0x58] sm:$0xff]
    %v310 = vld [vmem:[#allocation8 + $0x60] sm:$0xff]
    %v311 = vld [vmem:[#allocation8 + $0x68] sm:$0xff]
    %v312 = vld [vmem:[#allocation8 + $0x70] sm:$0xff]
    %v313 = vld [vmem:[#allocation8 + $0x78] sm:$0xff]
    %v314 = vld [vmem:[#allocation8 + $0x80] sm:$0xff]
    %v315 = vld [vmem:[#allocation8 + $0x88] sm:$0xff]
    %v316 = vld [vmem:[#allocation8 + $0x90] sm:$0xff]
    %v317 = vld [vmem:[#allocation8 + $0x98] sm:$0xff]
    %v318 = vld [vmem:[#allocation8 + $0xa0] sm:$0xff]
    %v319 = vld [vmem:[#allocation8 + $0xa8] sm:$0xff]
    %v320 = vld [vmem:[#allocation8 + $0xb0] sm:$0xff]
    %v321 = vld [vmem:[#allocation8 + $0xb8] sm:$0xff]
    %v322 = vld [vmem:[#allocation8 + $0xc0] sm:$0xff]
    %v323 = vld [vmem:[#allocation8 + $0xc8] sm:$0xff]
    %v324 = vld [vmem:[#allocation8 + $0xd0] sm:$0xff]
    %v325 = vld [vmem:[#allocation8 + $0xd8] sm:$0xff]
    %v326 = vld [vmem:[#allocation8 + $0xe0] sm:$0xff]
    %v327 = vld [vmem:[#allocation8 + $0xe8] sm:$0xff]
    %v328 = vld [vmem:[#allocation8 + $0xf0] sm:$0xff]
    %v329 = vld [vmem:[#allocation8 + $0xf8] sm:$0xff]
    %330 = vmatpush.msra.mxu0 %v313
    %331 = vmatpush.msra.mxu0 %v312
    %332 = vmatpush.msra.mxu0 %v311
    %333 = vmatpush.msra.mxu0 %v310
    %334 = vmatpush.msra.mxu0 %v309
    %335 = vmatpush.msra.mxu0 %v308
    %336 = vmatpush.msra.mxu0 %v307
    %337 = vmatpush.msra.mxu0 %v306
    %338 = vmatpush.msra.mxu0 %v305
    %339 = vmatpush.msra.mxu0 %v304
    %340 = vmatpush.msra.mxu0 %v303
    %341 = vmatpush.msra.mxu0 %v302
    %342 = vmatpush.msra.mxu0 %v301
    %343 = vmatpush.msra.mxu0 %v300
    %344 = vmatpush.msra.mxu0 %v299
    %345 = vmatpush.msra.mxu0 %v298
    %346 = vmatmul.f32.gmra.mxu0 %v266
    %v347 = vpop.f32.mrf.mxu0
    %v348 = vadd.f32 0.0, %v347
    %349 = vmatmul.f32.gmra.mxu0 %v268
    %v350 = vpop.f32.mrf.mxu0
    %v351 = vadd.f32 0.0, %v350
    %352 = vmatmul.f32.gmra.mxu0 %v270
    %v353 = vpop.f32.mrf.mxu0
    %v354 = vadd.f32 0.0, %v353
    %355 = vmatmul.f32.gmra.mxu0 %v272
    %v356 = vpop.f32.mrf.mxu0
    %v357 = vadd.f32 0.0, %v356
    %358 = vmatmul.f32.gmra.mxu0 %v274
    %v359 = vpop.f32.mrf.mxu0
    %v360 = vadd.f32 0.0, %v359
    %361 = vmatmul.f32.gmra.mxu0 %v276
    %v362 = vpop.f32.mrf.mxu0
    %v363 = vadd.f32 0.0, %v362
    %364 = vmatmul.f32.gmra.mxu0 %v278
    %v365 = vpop.f32.mrf.mxu0
    %v366 = vadd.f32 0.0, %v365
    %367 = vmatmul.f32.gmra.mxu0 %v280
    %v368 = vpop.f32.mrf.mxu0
    %v369 = vadd.f32 0.0, %v368
    %370 = vmatmul.f32.gmra.mxu0 %v282
    %v371 = vpop.f32.mrf.mxu0
    %v372 = vadd.f32 0.0, %v371
    %373 = vmatmul.f32.gmra.mxu0 %v284
    %v374 = vpop.f32.mrf.mxu0
    %v375 = vadd.f32 0.0, %v374
    %376 = vmatmul.f32.gmra.mxu0 %v286
    %v377 = vpop.f32.mrf.mxu0
    %v378 = vadd.f32 0.0, %v377
    %379 = vmatmul.f32.gmra.mxu0 %v288
    %v380 = vpop.f32.mrf.mxu0
    %v381 = vadd.f32 0.0, %v380
    %382 = vmatmul.f32.gmra.mxu0 %v290
    %v383 = vpop.f32.mrf.mxu0
    %v384 = vadd.f32 0.0, %v383
    %385 = vmatmul.f32.gmra.mxu0 %v292
    %v386 = vpop.f32.mrf.mxu0
    %v387 = vadd.f32 0.0, %v386
    %388 = vmatmul.f32.gmra.mxu0 %v294
    %v389 = vpop.f32.mrf.mxu0
    %v390 = vadd.f32 0.0, %v389
    %391 = vmatmul.f32.gmra.mxu0 %v296
    %v392 = vpop.f32.mrf.mxu0
    %v393 = vadd.f32 0.0, %v392
    %394 = vdwg.mxu0
    %395 = vmatpush.msra.mxu0 %v329
    %396 = vmatpush.msra.mxu0 %v328
    %397 = vmatpush.msra.mxu0 %v327
    %398 = vmatpush.msra.mxu0 %v326
    %399 = vmatpush.msra.mxu0 %v325
    %400 = vmatpush.msra.mxu0 %v324
    %401 = vmatpush.msra.mxu0 %v323
    %402 = vmatpush.msra.mxu0 %v322
    %403 = vmatpush.msra.mxu0 %v321
    %404 = vmatpush.msra.mxu0 %v320
    %405 = vmatpush.msra.mxu0 %v319
    %406 = vmatpush.msra.mxu0 %v318
    %407 = vmatpush.msra.mxu0 %v317
    %408 = vmatpush.msra.mxu0 %v316
    %409 = vmatpush.msra.mxu0 %v315
    %410 = vmatpush.msra.mxu0 %v314
    %411 = vmatmul.f32.gmra.mxu0 %v267
    %v412 = vpop.f32.mrf.mxu0
    %v413 = vadd.f32 %v348, %v412
    %414 = vmatmul.f32.gmra.mxu0 %v269
    %v415 = vpop.f32.mrf.mxu0
    %v416 = vadd.f32 %v351, %v415
    %417 = vmatmul.f32.gmra.mxu0 %v271
    %v418 = vpop.f32.mrf.mxu0
    %v419 = vadd.f32 %v354, %v418
    %420 = vmatmul.f32.gmra.mxu0 %v273
    %v421 = vpop.f32.mrf.mxu0
    %v422 = vadd.f32 %v357, %v421
    %423 = vmatmul.f32.gmra.mxu0 %v275
    %v424 = vpop.f32.mrf.mxu0
    %v425 = vadd.f32 %v360, %v424
    %426 = vmatmul.f32.gmra.mxu0 %v277
    %v427 = vpop.f32.mrf.mxu0
    %v428 = vadd.f32 %v363, %v427
    %429 = vmatmul.f32.gmra.mxu0 %v279
    %v430 = vpop.f32.mrf.mxu0
    %v431 = vadd.f32 %v366, %v430
    %432 = vmatmul.f32.gmra.mxu0 %v281
    %v433 = vpop.f32.mrf.mxu0
    %v434 = vadd.f32 %v369, %v433
    %435 = vmatmul.f32.gmra.mxu0 %v283
    %v436 = vpop.f32.mrf.mxu0
    %v437 = vadd.f32 %v372, %v436
    %438 = vmatmul.f32.gmra.mxu0 %v285
    %v439 = vpop.f32.mrf.mxu0
    %v440 = vadd.f32 %v375, %v439
    %441 = vmatmul.f32.gmra.mxu0 %v287
    %v442 = vpop.f32.mrf.mxu0
    %v443 = vadd.f32 %v378, %v442
    %444 = vmatmul.f32.gmra.mxu0 %v289
    %v445 = vpop.f32.mrf.mxu0
    %v446 = vadd.f32 %v381, %v445
    %447 = vmatmul.f32.gmra.mxu0 %v291
    %v448 = vpop.f32.mrf.mxu0
    %v449 = vadd.f32 %v384, %v448
    %450 = vmatmul.f32.gmra.mxu0 %v293
    %v451 = vpop.f32.mrf.mxu0
    %v452 = vadd.f32 %v387, %v451
    %453 = vmatmul.f32.gmra.mxu0 %v295
    %v454 = vpop.f32.mrf.mxu0
    %v455 = vadd.f32 %v390, %v454
    %456 = vmatmul.f32.gmra.mxu0 %v297
    %v457 = vpop.f32.mrf.mxu0
    %v458 = vadd.f32 %v393, %v457
    %459 = vdwg.mxu0
    %p460 = scmp.eq.s32.totalorder 0, 0
    // Predicated region
    $region38: #{tpu_custom_call.1} parent=1 // pred_check
      %p461 = pneg %p460
    $region39: #{tpu_custom_call.1} parent=1 // pred_check_branch
      %463 = sbr.rel (%p461) target = $region41
    $region40: #{tpu_custom_call.1} parent=1 // pred_region
      %464 = vst [vmem:[#allocation10] sm:$0xff] %v413
      %465 = vst [vmem:[#allocation10 + $0x8] sm:$0xff] %v416
      %466 = vst [vmem:[#allocation10 + $0x10] sm:$0xff] %v419
      %467 = vst [vmem:[#allocation10 + $0x18] sm:$0xff] %v422
      %468 = vst [vmem:[#allocation10 + $0x20] sm:$0xff] %v425
      %469 = vst [vmem:[#allocation10 + $0x28] sm:$0xff] %v428
      %470 = vst [vmem:[#allocation10 + $0x30] sm:$0xff] %v431
      %471 = vst [vmem:[#allocation10 + $0x38] sm:$0xff] %v434
      %472 = vst [vmem:[#allocation10 + $0x40] sm:$0xff] %v437
      %473 = vst [vmem:[#allocation10 + $0x48] sm:$0xff] %v440
      %474 = vst [vmem:[#allocation10 + $0x50] sm:$0xff] %v443
      %475 = vst [vmem:[#allocation10 + $0x58] sm:$0xff] %v446
      %476 = vst [vmem:[#allocation10 + $0x60] sm:$0xff] %v449
      %477 = vst [vmem:[#allocation10 + $0x68] sm:$0xff] %v452
      %478 = vst [vmem:[#allocation10 + $0x70] sm:$0xff] %v455
      %479 = vst [vmem:[#allocation10 + $0x78] sm:$0xff] %v458
    $region41: #{tpu_custom_call.1} parent=1 // pred_fallthru
      _
    %p480 = scmp.gt.s32.totalorder 0, 0
    // Predicated region
    $region42: #{tpu_custom_call.1} parent=1 // pred_check
      %p481 = pneg %p480
    $region43: #{tpu_custom_call.1} parent=1 // pred_check_branch
      %483 = sbr.rel (%p481) target = $region45
    $region44: #{tpu_custom_call.1} parent=1 // pred_region
      %v484 = vld [vmem:[#allocation10] sm:$0xff]
      %v485 = vld [vmem:[#allocation10 + $0x8] sm:$0xff]
      %v486 = vld [vmem:[#allocation10 + $0x10] sm:$0xff]
      %v487 = vld [vmem:[#allocation10 + $0x18] sm:$0xff]
      %v488 = vld [vmem:[#allocation10 + $0x20] sm:$0xff]
      %v489 = vld [vmem:[#allocation10 + $0x28] sm:$0xff]
      %v490 = vld [vmem:[#allocation10 + $0x30] sm:$0xff]
      %v491 = vld [vmem:[#allocation10 + $0x38] sm:$0xff]
      %v492 = vld [vmem:[#allocation10 + $0x40] sm:$0xff]
      %v493 = vld [vmem:[#allocation10 + $0x48] sm:$0xff]
      %v494 = vld [vmem:[#allocation10 + $0x50] sm:$0xff]
      %v495 = vld [vmem:[#allocation10 + $0x58] sm:$0xff]
      %v496 = vld [vmem:[#allocation10 + $0x60] sm:$0xff]
      %v497 = vld [vmem:[#allocation10 + $0x68] sm:$0xff]
      %v498 = vld [vmem:[#allocation10 + $0x70] sm:$0xff]
      %v499 = vld [vmem:[#allocation10 + $0x78] sm:$0xff]
      %v500 = vadd.f32 %v484, %v413
      %v501 = vadd.f32 %v485, %v416
      %v502 = vadd.f32 %v486, %v419
      %v503 = vadd.f32 %v487, %v422
      %v504 = vadd.f32 %v488, %v425
      %v505 = vadd.f32 %v489, %v428
      %v506 = vadd.f32 %v490, %v431
      %v507 = vadd.f32 %v491, %v434
      %v508 = vadd.f32 %v492, %v437
      %v509 = vadd.f32 %v493, %v440
      %v510 = vadd.f32 %v494, %v443
      %v511 = vadd.f32 %v495, %v446
      %v512 = vadd.f32 %v496, %v449
      %v513 = vadd.f32 %v497, %v452
      %v514 = vadd.f32 %v498, %v455
      %v515 = vadd.f32 %v499, %v458
      %516 = vst [vmem:[#allocation10] sm:$0xff] %v500
      %517 = vst [vmem:[#allocation10 + $0x8] sm:$0xff] %v501
      %518 = vst [vmem:[#allocation10 + $0x10] sm:$0xff] %v502
      %519 = vst [vmem:[#allocation10 + $0x18] sm:$0xff] %v503
      %520 = vst [vmem:[#allocation10 + $0x20] sm:$0xff] %v504
      %521 = vst [vmem:[#allocation10 + $0x28] sm:$0xff] %v505
      %522 = vst [vmem:[#allocation10 + $0x30] sm:$0xff] %v506
      %523 = vst [vmem:[#allocation10 + $0x38] sm:$0xff] %v507
      %524 = vst [vmem:[#allocation10 + $0x40] sm:$0xff] %v508
      %525 = vst [vmem:[#allocation10 + $0x48] sm:$0xff] %v509
      %526 = vst [vmem:[#allocation10 + $0x50] sm:$0xff] %v510
      %527 = vst [vmem:[#allocation10 + $0x58] sm:$0xff] %v511
      %528 = vst [vmem:[#allocation10 + $0x60] sm:$0xff] %v512
      %529 = vst [vmem:[#allocation10 + $0x68] sm:$0xff] %v513
      %530 = vst [vmem:[#allocation10 + $0x70] sm:$0xff] %v514
      %531 = vst [vmem:[#allocation10 + $0x78] sm:$0xff] %v515
    $region45: #{tpu_custom_call.1} parent=1 // pred_fallthru
      _
    // Predicated region
    $region46: #{tpu_custom_call.1} parent=1 // pred_check
      %p532 = pneg %p460
    $region47: #{tpu_custom_call.1} parent=1 // pred_check_branch
      %534 = sbr.rel (%p532) target = $region49
    $region48: #{tpu_custom_call.1} parent=1 // pred_region
      %v535 = vld [vmem:[#allocation10] sm:$0xff]
      %v536 = vld [vmem:[#allocation10 + $0x8] sm:$0xff]
      %v537 = vld [vmem:[#allocation10 + $0x10] sm:$0xff]
      %v538 = vld [vmem:[#allocation10 + $0x18] sm:$0xff]
      %v539 = vld [vmem:[#allocation10 + $0x20] sm:$0xff]
      %v540 = vld [vmem:[#allocation10 + $0x28] sm:$0xff]
      %v541 = vld [vmem:[#allocation10 + $0x30] sm:$0xff]
      %v542 = vld [vmem:[#allocation10 + $0x38] sm:$0xff]
      %v543 = vld [vmem:[#allocation10 + $0x40] sm:$0xff]
      %v544 = vld [vmem:[#allocation10 + $0x48] sm:$0xff]
      %v545 = vld [vmem:[#allocation10 + $0x50] sm:$0xff]
      %v546 = vld [vmem:[#allocation10 + $0x58] sm:$0xff]
      %v547 = vld [vmem:[#allocation10 + $0x60] sm:$0xff]
      %v548 = vld [vmem:[#allocation10 + $0x68] sm:$0xff]
      %v549 = vld [vmem:[#allocation10 + $0x70] sm:$0xff]
      %v550 = vld [vmem:[#allocation10 + $0x78] sm:$0xff]
      %v551 = vld [vmem:[%s4] sm:$0x1]
      %v553 = vperm.slane %v551, 0
      %v555 = vadd.f32 %v535, %v553
      %v556 = vadd.f32 %v536, %v553
      %v557 = vadd.f32 %v537, %v553
      %v558 = vadd.f32 %v538, %v553
      %v559 = vadd.f32 %v539, %v553
      %v560 = vadd.f32 %v540, %v553
      %v561 = vadd.f32 %v541, %v553
      %v562 = vadd.f32 %v542, %v553
      %v563 = vadd.f32 %v543, %v553
      %v564 = vadd.f32 %v544, %v553
      %v565 = vadd.f32 %v545, %v553
      %v566 = vadd.f32 %v546, %v553
      %v567 = vadd.f32 %v547, %v553
      %v568 = vadd.f32 %v548, %v553
      %v569 = vadd.f32 %v549, %v553
      %v570 = vadd.f32 %v550, %v553
      %571 = vst [vmem:[#allocation10] sm:$0xff] %v555
      %572 = vst [vmem:[#allocation10 + $0x8] sm:$0xff] %v556
      %573 = vst [vmem:[#allocation10 + $0x10] sm:$0xff] %v557
      %574 = vst [vmem:[#allocation10 + $0x18] sm:$0xff] %v558
      %575 = vst [vmem:[#allocation10 + $0x20] sm:$0xff] %v559
      %576 = vst [vmem:[#allocation10 + $0x28] sm:$0xff] %v560
      %577 = vst [vmem:[#allocation10 + $0x30] sm:$0xff] %v561
      %578 = vst [vmem:[#allocation10 + $0x38] sm:$0xff] %v562
      %579 = vst [vmem:[#allocation10 + $0x40] sm:$0xff] %v563
      %580 = vst [vmem:[#allocation10 + $0x48] sm:$0xff] %v564
      %581 = vst [vmem:[#allocation10 + $0x50] sm:$0xff] %v565
      %582 = vst [vmem:[#allocation10 + $0x58] sm:$0xff] %v566
      %583 = vst [vmem:[#allocation10 + $0x60] sm:$0xff] %v567
      %584 = vst [vmem:[#allocation10 + $0x68] sm:$0xff] %v568
      %585 = vst [vmem:[#allocation10 + $0x70] sm:$0xff] %v569
      %586 = vst [vmem:[#allocation10 + $0x78] sm:$0xff] %v570
    $region49: #{tpu_custom_call.1} parent=1 // pred_fallthru
      _
    // Predicated region
    $region50: #{tpu_custom_call.1} parent=1 // pred_check
      _
    $region51: #{tpu_custom_call.1} parent=1 // pred_check_branch
      %588 = sbr.rel (0) target = $region53
    $region52: #{tpu_custom_call.1} parent=1 // pred_region
      %590 = vsyncadd [#allocation4], 0
      %s591 = sshll.u32 [#allocation10], 4
      %s592 = int_to_ptr.vmem [resolvable:$true] %s591
      %s593 = sshll.u32 %s5, 4
      %s594 = int_to_ptr.hbm [resolvable:$true] %s593
      %599 = dma.vmem_to_hbm [thread:$0]  %s592, 2048, %s594, [#allocation4], 128, 128, 8
    $region53: #{tpu_custom_call.1} parent=1 // pred_fallthru
      _
    // Predicated region
    $region54: #{tpu_custom_call.1} parent=1 // pred_check
      _
    $region55: #{tpu_custom_call.1} parent=1 // pred_check_branch
      %601 = sbr.rel (0) target = $region57
    $region56: #{tpu_custom_call.1} parent=1 // pred_region
      %603 = dma.done [#allocation4], 2048
    $region57: #{tpu_custom_call.1} parent=1 // pred_fallthru
      _
    %604 = vsyncpa [#allocation3], 1
    %605 = vsyncpa [#allocation6], 1
    %606 = vsyncpa [#allocation9], 1
    %607 = vsyncpa [#allocation4], 1

</llo_original>
